<compile_context>
chip_gen: v7x
topology: tpu7x:2x2x1
jax: 0.10.0
libtpu: 0.0.40
codegen_flags: <defaults>
</compile_context>

<pallas_src>
import jax
import jax.numpy as jnp
from jax import lax
from jax.experimental import pallas as pl
from jax.experimental.pallas import tpu as pltpu


_MIB = 1024 * 1024


# ----------------------------- budgets / tiling -------------------------------

def _vmem_capacity_bytes():
    try:
        cap = getattr(pltpu.get_tpu_info(), "vmem_capacity_bytes", None)
        if cap:
            return int(cap)
    except Exception:
        pass
    return 64 * _MIB  # conservative: v7x per-TC VMEM


def _budgets():
    cap = _vmem_capacity_bytes()
    block_budget = max(4 * _MIB, cap // 8)   # ~8 MiB on 64-MiB parts, ~16 MiB on 128-MiB parts
    vmem_ceil = (cap * 3) // 4               # leave headroom for compiler scratch
    return block_budget, vmem_ceil


def _vmem_limit_bytes(vmem_ceil, *operand_block_bytes):
    # Each pipelined operand is double-buffered; add slack for internal scratch.
    need = 2 * sum(int(b) for b in operand_block_bytes) + 2 * _MIB
    return int(min(vmem_ceil, max(16 * _MIB, need)))


def _pick_l_tile(length):
    """Lane-dense (multiple of 128) L tile minimizing last-tile padding."""
    if length <= 640:
        return length
    best_tl, best_pad = None, None
    for tl in (256, 384, 512, 640, 768):
        pad = (-length) % tl
        if best_pad is None or pad < best_pad or (pad == best_pad and tl > best_tl):
            best_tl, best_pad = tl, pad
    return best_tl


# ------------------------------- fused kernel ---------------------------------

def _se_fused_ncw_kernel(x_ref, w1t_ref, w2t_ref, o_ref):
    """x_ref / o_ref: (TB, C, L) with L on lanes. Gate math stays (TB, C)-sized f32."""
    y = jnp.mean(x_ref[...].astype(jnp.float32), axis=-1)                       # (TB, C)
    h = jnp.maximum(
        jnp.dot(y, w1t_ref[...], preferred_element_type=jnp.float32), 0.0)      # (TB, Cr)
    s = jax.nn.sigmoid(
        jnp.dot(h, w2t_ref[...], preferred_element_type=jnp.float32))           # (TB, C)
    o_ref[...] = (x_ref[...] * s.astype(x_ref.dtype)[:, :, None]).astype(o_ref.dtype)


# --------------------------- streamed (split) kernels -------------------------

def _make_squeeze_excite_kernel(length, tile_l):
    """L-tiled mean reduction + excite; accumulates into the (TB, C, 1) output."""
    inv_len = 1.0 / float(length)
    has_tail = (length % tile_l) != 0

    def kernel(x_ref, w1t_ref, w2t_ref, g_ref):
        li = pl.program_id(1)
        last = pl.num_programs(1) - 1

        @pl.when(li == 0)
        def _init():
            g_ref[...] = jnp.zeros_like(g_ref)

        if not has_tail:
            g_ref[...] += jnp.sum(x_ref[...].astype(jnp.float32),
                                  axis=-1, keepdims=True)                        # (TB, C, 1)
        else:
            @pl.when(li != last)
            def _full_tile():
                g_ref[...] += jnp.sum(x_ref[...].astype(jnp.float32),
                                      axis=-1, keepdims=True)

            @pl.when(li == last)
            def _tail_tile():
                lane = lax.broadcasted_iota(jnp.int32, x_ref.shape, 2)
                valid = (li * tile_l + lane) < length
                xs = jnp.where(valid, x_ref[...].astype(jnp.float32), 0.0)
                g_ref[...] += jnp.sum(xs, axis=-1, keepdims=True)

        @pl.when(li == last)
        def _finalize():
            y = jnp.sum(g_ref[...], axis=-1) * inv_len                           # (TB, C)
            h = jnp.maximum(
                jnp.dot(y, w1t_ref[...], preferred_element_type=jnp.float32), 0.0)
            s = jax.nn.sigmoid(
                jnp.dot(h, w2t_ref[...], preferred_element_type=jnp.float32))
            g_ref[...] = s[:, :, None]

    return kernel


def _scale_kernel(x_ref, g_ref, o_ref):
    """x_ref / o_ref: (TB, C, TL); g_ref: (TB, C, 1) f32 gates (broadcast over lanes)."""
    o_ref[...] = (x_ref[...] * g_ref[...].astype(x_ref.dtype)).astype(o_ref.dtype)


# ---------------------------------- wrapper -----------------------------------

def se_block_1d(x, w1, w2, *, force_split=False, donate_x=False):
    """Squeeze-Excite for 1D feature maps.

    x:  (B, C, L) activations (NCW, PyTorch convention).
    w1: (C//r, C) first Linear weight (PyTorch (out, in) layout, no bias).
    w2: (C, C//r) second Linear weight (no bias).
    """
    B, C, L = x.shape
    Cr = w1.shape[0]
    assert w1.shape == (Cr, C) and w2.shape == (C, Cr)

    itemsize = x.dtype.itemsize
    block_budget, vmem_ceil = _budgets()

    # Pre-transpose weights once (PyTorch Linear computes y @ W^T).
    w1t = jnp.asarray(w1, jnp.float32).T      # (C, Cr)
    w2t = jnp.asarray(w2, jnp.float32).T      # (Cr, C)
    w_bytes = 2 * C * Cr * 4

    bytes_per_sample = C * L * itemsize
    use_split = force_split or bytes_per_sample > block_budget

    alias_kwargs = {"input_output_aliases": {0: 0}} if donate_x else {}

    if not use_split:
        # ---- fused path: one (TB, C, L) block per grid step, single HBM read+write ----
        steps_target = min(B, 8)   # >=2 steps for v7x megacore, >=4 for pipeline overlap
        tb = max(1, min(B,
                        block_budget // max(1, bytes_per_sample),
                        pl.cdiv(B, steps_target)))
        block_bytes = tb * bytes_per_sample

        cost_fused = pl.CostEstimate(
            flops=3 * B * C * L + 4 * B * C * Cr,
            transcendentals=B * C,
            bytes_accessed=2 * B * C * L * itemsize + w_bytes,
        )

        return pl.pallas_call(
            _se_fused_ncw_kernel,
            out_shape=jax.ShapeDtypeStruct((B, C, L), x.dtype),
            grid_spec=pltpu.PrefetchScalarGridSpec(
                num_scalar_prefetch=0,
                grid=(pl.cdiv(B, tb),),
                in_specs=[
                    pl.BlockSpec((tb, C, L), lambda b: (b, 0, 0)),
                    pl.BlockSpec((C, Cr), lambda b: (0, 0)),
                    pl.BlockSpec((Cr, C), lambda b: (0, 0)),
                ],
                out_specs=pl.BlockSpec((tb, C, L), lambda b: (b, 0, 0)),
            ),
            compiler_params=pltpu.CompilerParams(
                dimension_semantics=("parallel",),
                vmem_limit_bytes=_vmem_limit_bytes(
                    vmem_ceil, block_bytes, block_bytes, w_bytes),
            ),
            cost_estimate=cost_fused,
            **alias_kwargs,
        )(x, w1t, w2t)

    # ---- streamed path for large per-sample feature maps (C kept whole) ----
    tl = _pick_l_tile(L)
    row_bytes = C * tl * itemsize
    tbg = max(1, min(B, 64,
                     block_budget // max(1, row_bytes),
                     pl.cdiv(B, 2)))

    cost_p1 = pl.CostEstimate(
        flops=2 * B * C * L + 4 * B * C * Cr,
        transcendentals=B * C,
        bytes_accessed=B * C * L * itemsize + B * C * 4 + w_bytes,
    )
    cost_p2 = pl.CostEstimate(
        flops=B * C * L,
        transcendentals=0,
        bytes_accessed=2 * B * C * L * itemsize + B * C * 4,
    )

    # Pass 1: L-tiled squeeze + excite -> f32 gates of shape (B, C, 1).
    gates = pl.pallas_call(
        _make_squeeze_excite_kernel(L, tl),
        out_shape=jax.ShapeDtypeStruct((B, C, 1), jnp.float32),
        grid_spec=pltpu.PrefetchScalarGridSpec(
            num_scalar_prefetch=0,
            grid=(pl.cdiv(B, tbg), pl.cdiv(L, tl)),
            in_specs=[
                pl.BlockSpec((tbg, C, tl), lambda b, l: (b, 0, l)),
                pl.BlockSpec((C, Cr), lambda b, l: (0, 0)),
                pl.BlockSpec((Cr, C), lambda b, l: (0, 0)),
            ],
            out_specs=pl.BlockSpec((tbg, C, 1), lambda b, l: (b, 0, 0)),
        ),
        compiler_params=pltpu.CompilerParams(
            dimension_semantics=("parallel", "arbitrary"),
            vmem_limit_bytes=_vmem_limit_bytes(
                vmem_ceil, tbg * row_bytes, tbg * C * 4, w_bytes),
        ),
        cost_estimate=cost_p1,
    )(x, w1t, w2t)

    # Pass 2: L-tiled broadcast scale.
    tbs = tbg
    return pl.pallas_call(
        _scale_kernel,
        out_shape=jax.ShapeDtypeStruct((B, C, L), x.dtype),
        grid_spec=pltpu.PrefetchScalarGridSpec(
            num_scalar_prefetch=0,
            grid=(pl.cdiv(B, tbs), pl.cdiv(L, tl)),
            in_specs=[
                pl.BlockSpec((tbs, C, tl), lambda b, l: (b, 0, l)),
                pl.BlockSpec((tbs, C, 1), lambda b, l: (b, 0, 0)),
            ],
            out_specs=pl.BlockSpec((tbs, C, tl), lambda b, l: (b, 0, l)),
        ),
        compiler_params=pltpu.CompilerParams(
            dimension_semantics=("parallel", "parallel"),
            vmem_limit_bytes=_vmem_limit_bytes(
                vmem_ceil, tbs * row_bytes, tbs * row_bytes, tbs * C * 4),
        ),
        cost_estimate=cost_p2,
        **alias_kwargs,
    )(x, gates)


# --------------------------------- reference -----------------------------------

def se_block_1d_ref(x, w1, w2):
    """Pure-JAX reference matching the PyTorch forward."""
    y = jnp.mean(x.astype(jnp.float32), axis=-1)                                 # (B, C)
    h = jnp.maximum(
        jnp.dot(y, jnp.asarray(w1, jnp.float32).T, precision=lax.Precision.HIGHEST),
        0.0)
    s = jax.nn.sigmoid(
        jnp.dot(h, jnp.asarray(w2, jnp.float32).T, precision=lax.Precision.HIGHEST))
    return (x * s[:, :, None].astype(x.dtype)).astype(x.dtype)


if __name__ == "__main__":
    def make_inputs(key, B, C, L, reduction):
        Cr = max(1, C // reduction)
        kx, k1, k2 = jax.random.split(key, 3)
        x = jax.random.normal(kx, (B, C, L), dtype=jnp.float32)
        # PyTorch Linear weight layout: (out_features, in_features), no bias.
        w1 = jax.random.normal(k1, (Cr, C), dtype=jnp.float32) * (1.0 / float(C) ** 0.5)
        w2 = jax.random.normal(k2, (C, Cr), dtype=jnp.float32) * (1.0 / float(Cr) ** 0.5)
        return x, w1, w2

    key = jax.random.PRNGKey(0)
    ka, kb = jax.random.split(key)

    # Case 1: fused NCW path at spec-sized shapes (grid of 2 -> both v7x cores busy).
    x, w1, w2 = make_inputs(ka, B=2, C=32, L=16, reduction=4)
    out = jax.block_until_ready(se_block_1d(x, w1, w2))
    ref = se_block_1d_ref(x, w1, w2)
    assert out.shape == x.shape and out.dtype == x.dtype
    assert jnp.allclose(out, ref, atol=1e-3, rtol=1e-3), float(jnp.max(jnp.abs(out - ref)))

    # Case 2: streamed two-pass path (forced), unaligned L -> masked last tile.
    x, w1, w2 = make_inputs(kb, B=3, C=64, L=1000, reduction=4)
    out = jax.block_until_ready(se_block_1d(x, w1, w2, force_split=True))
    ref = se_block_1d_ref(x, w1, w2)
    assert jnp.allclose(out, ref, atol=1e-3, rtol=1e-3), float(jnp.max(jnp.abs(out - ref)))

    print("KERNEL_OK")
</pallas_src>

<mosaic_0001>
module attributes {stable_mosaic.version = 11 : i64} {
  func.func @_se_fused_ncw_kernel(%arg0: i32, %arg1: memref<1x32x16xf32, #tpu.memory_space<vmem>>, %arg2: memref<32x8xf32, #tpu.memory_space<vmem>>, %arg3: memref<8x32xf32, #tpu.memory_space<vmem>>, %arg4: memref<1x32x16xf32, #tpu.memory_space<vmem>>) attributes {dimension_semantics = [#tpu.dimension_semantics<parallel>], iteration_bounds = array<i64: 2>, scalar_prefetch = 0 : i64, scratch_operands = 0 : i64, tpu.core_type = #tpu.core_type<tc>, window_params = [{transform_indices = @transform_0, window_bounds = array<i64: 1, 32, 16>}, {pipeline_mode = #tpu.pipeline_mode<synchronous>, transform_indices = @transform_1, window_bounds = array<i64: 32, 8>}, {pipeline_mode = #tpu.pipeline_mode<synchronous>, transform_indices = @transform_2, window_bounds = array<i64: 8, 32>}, {transform_indices = @transform_3, window_bounds = array<i64: 1, 32, 16>}]} {
    %c0 = arith.constant 0 : index
    %c0_0 = arith.constant 0 : index
    %c0_1 = arith.constant 0 : index
    %0 = vector.load %arg1[%c0, %c0_0, %c0_1] : memref<1x32x16xf32, #tpu.memory_space<vmem>>, vector<1x32x16xf32>
    %cst = arith.constant dense<0.000000e+00> : vector<1x32xf32>
    %1 = vector.multi_reduction <add>, %0, %cst [2] : vector<1x32x16xf32> to vector<1x32xf32>
    %cst_2 = arith.constant 1.600000e+01 : f32
    %2 = vector.broadcast %cst_2 : f32 to vector<1x32xf32>
    %3 = arith.divf %1, %2 : vector<1x32xf32>
    %c0_3 = arith.constant 0 : index
    %c0_4 = arith.constant 0 : index
    %4 = vector.load %arg2[%c0_3, %c0_4] : memref<32x8xf32, #tpu.memory_space<vmem>>, vector<32x8xf32>
    %cst_5 = arith.constant dense<0.000000e+00> : vector<1x8xf32>
    %5 = tpu.matmul %3, %4, %cst_5 {dimension_numbers = #tpu.dot_dimension_numbers<[1], [0], [0], [1], [0, 0, 1, 1], [], []>} : vector<1x32xf32>, vector<32x8xf32>, vector<1x8xf32> -> vector<1x8xf32>
    %cst_6 = arith.constant 0.000000e+00 : f32
    %6 = vector.broadcast %cst_6 : f32 to vector<1x8xf32>
    %7 = arith.maximumf %5, %6 : vector<1x8xf32>
    %c0_7 = arith.constant 0 : index
    %c0_8 = arith.constant 0 : index
    %8 = vector.load %arg3[%c0_7, %c0_8] : memref<8x32xf32, #tpu.memory_space<vmem>>, vector<8x32xf32>
    %cst_9 = arith.constant dense<0.000000e+00> : vector<1x32xf32>
    %9 = tpu.matmul %7, %8, %cst_9 {dimension_numbers = #tpu.dot_dimension_numbers<[1], [0], [0], [1], [0, 0, 1, 1], [], []>} : vector<1x8xf32>, vector<8x32xf32>, vector<1x32xf32> -> vector<1x32xf32>
    %10 = arith.negf %9 : vector<1x32xf32>
    %11 = math.exp %10 : vector<1x32xf32>
    %cst_10 = arith.constant 1.000000e+00 : f32
    %12 = vector.broadcast %cst_10 : f32 to vector<1x32xf32>
    %13 = arith.addf %12, %11 : vector<1x32xf32>
    %14 = arith.divf %12, %13 : vector<1x32xf32>
    %c0_11 = arith.constant 0 : index
    %c0_12 = arith.constant 0 : index
    %c0_13 = arith.constant 0 : index
    %15 = vector.load %arg1[%c0_11, %c0_12, %c0_13] : memref<1x32x16xf32, #tpu.memory_space<vmem>>, vector<1x32x16xf32>
    %16 = vector.shape_cast %14 : vector<1x32xf32> to vector<1x32x1xf32>
    %17 = vector.broadcast %16 : vector<1x32x1xf32> to vector<1x32x16xf32>
    %18 = arith.mulf %15, %17 : vector<1x32x16xf32>
    %c0_14 = arith.constant 0 : index
    %c0_15 = arith.constant 0 : index
    %c0_16 = arith.constant 0 : index
    %19 = vector.load %arg4[%c0_14, %c0_15, %c0_16] : memref<1x32x16xf32, #tpu.memory_space<vmem>>, vector<1x32x16xf32>
    tpu.vector_store %arg4[%c0_14, %c0_15, %c0_16], %18 {strides = array<i32>} : memref<1x32x16xf32, #tpu.memory_space<vmem>>, vector<1x32x16xf32>,
    return
  }
  func.func @transform_0(%arg0: i32) -> (i32, i32, i32) {
    %c0_i32 = arith.constant 0 : i32
    %c0_i32_0 = arith.constant 0 : i32
    %c0_i32_1 = arith.constant 0 : i32
    return %arg0, %c0_i32, %c0_i32_0 : i32, i32, i32
  }
  func.func @transform_1(%arg0: i32) -> (i32, i32) {
    %c0_i32 = arith.constant 0 : i32
    %c0_i32_0 = arith.constant 0 : i32
    %c0_i32_1 = arith.constant 0 : i32
    return %c0_i32, %c0_i32_0 : i32, i32
  }
  func.func @transform_2(%arg0: i32) -> (i32, i32) {
    %c0_i32 = arith.constant 0 : i32
    %c0_i32_0 = arith.constant 0 : i32
    %c0_i32_1 = arith.constant 0 : i32
    return %c0_i32, %c0_i32_0 : i32, i32
  }
  func.func @transform_3(%arg0: i32) -> (i32, i32, i32) {
    %c0_i32 = arith.constant 0 : i32
    %c0_i32_0 = arith.constant 0 : i32
    %c0_i32_1 = arith.constant 0 : i32
    return %arg0, %c0_i32, %c0_i32_0 : i32, i32, i32
  }
}

</mosaic_0001>

<llo_original>
// kernel: tpu_custom_call.1
$region0: #{tpu_custom_call.1}
  #allocation0 [shape = 'u32[]', space=smem, size = 0x4, offset = 0x4, fixed_abs, tag = 'smem constant byte address 0x4 - core index']
  #allocation1 [shape = 'u32[144,128]{1,0:T(1,128)}', space=vmem, size = 0x12000, scoped, tag = 'internal scratch']
  %s0 = inlined_call_operand.vmem [shape: f32[2,32,16], index: 0, kind: input, shape index: {}]
  %s1 = inlined_call_operand.vmem [shape: f32[32,8], index: 1, kind: input, shape index: {}]
  %s2 = inlined_call_operand.vmem [shape: f32[8,32], index: 2, kind: input, shape index: {}]
  %s3 = inlined_call_operand.vmem [shape: f32[2,32,16], index: 3, kind: output, shape index: {}]
  %s4 = sld [smem:[#allocation0]]
  $region45: #{tpu_custom_call.1} parent=0
    _
  %s6 = ssub.s32 1, %s4
  %s7 = scalar_select 0, %s6, %s4
  loop: start=0, step=1, limit=4
  $region2: #{tpu_custom_call.1} parent=0 // loop_pre_header
    _
  $region3: #{tpu_custom_call.1} parent=0 // loop_header
    %s9 = sphi 0, %s13
    %p10 = scmp.ge.s32.totalorder %s9, 4
    %s19 = sphi 0, %s21
    %s22 = sphi 0, %s19
    %s23 = sphi 0, %s22
    %s39 = sphi 0, %s23
    %s43 = sphi 0, %s43
    %s45 = sphi 0, %s43
    %s46 = sphi 0, %s45
    %s60 = sphi 0, %s46
    %s64 = sphi 0, %s64
    %s66 = sphi 0, %s64
    %s67 = sphi 0, %s66
    %s81 = sphi 0, %s67
    %s87 = sphi 0, %s89
    %s90 = sphi 0, %s87
    %s91 = sphi 0, %s90
    %s107 = sphi 0, %s91
  $region4: #{tpu_custom_call.1} parent=0 // loop_header_branch
    %12 = sbr.rel (%p10) target = $region8
  $region5: #{tpu_custom_call.1} parent=0 // loop_body
    %s14 = ssub.s32 %s9, 1
    %s15 = ssub.s32 %s9, 2
    %s16 = sadd.s32 %s9, 1
    %s17 = ssub.s32 %s9, %s16
    %p18 = scmp.eq.s32.totalorder %s17, 0
    %s20 = sadd.s32 %s19, 1
    %s21 = scalar_select %p18, %s19, %s20
    %p24 = pneg %p18
    %p25 = scmp.eq.s32.totalorder %s9, 1
    %p26 = por %p24, %p25
    %p27 = scmp.ne.s32.totalorder %s19, %s22
    %p28 = scmp.eq.s32.totalorder %s9, 0
    %p29 = por %p27, %p28
    %p30 = scmp.ne.s32.totalorder %s19, %s22
    %p31 = scmp.eq.s32.totalorder %s14, 1
    %p32 = por %p30, %p31
    %p33 = scmp.ne.s32.totalorder %s22, %s23
    %p34 = scmp.eq.s32.totalorder %s14, 0
    %p35 = por %p33, %p34
    %p36 = scmp.ne.s32.totalorder %s22, %s23
    %p37 = scmp.eq.s32.totalorder %s15, 1
    %p38 = por %p36, %p37
    %p40 = scmp.ne.s32.totalorder %s23, %s39
    %p41 = scmp.eq.s32.totalorder %s15, 0
    %p42 = por %p40, %p41
    %s44 = sadd.s32 %s43, 1
    %p47 = scmp.eq.s32.totalorder %s9, 1
    %p48 = scmp.ne.s32.totalorder %s43, %s45
    %p49 = scmp.eq.s32.totalorder %s9, 0
    %p50 = por %p48, %p49
    %p51 = scmp.ne.s32.totalorder %s43, %s45
    %p52 = scmp.eq.s32.totalorder %s14, 1
    %p53 = por %p51, %p52
    %p54 = scmp.ne.s32.totalorder %s45, %s46
    %p55 = scmp.eq.s32.totalorder %s14, 0
    %p56 = por %p54, %p55
    %p57 = scmp.ne.s32.totalorder %s45, %s46
    %p58 = scmp.eq.s32.totalorder %s15, 1
    %p59 = por %p57, %p58
    %p61 = scmp.ne.s32.totalorder %s46, %s60
    %p62 = scmp.eq.s32.totalorder %s15, 0
    %p63 = por %p61, %p62
    %s65 = sadd.s32 %s64, 1
    %p68 = scmp.eq.s32.totalorder %s9, 1
    %p69 = scmp.ne.s32.totalorder %s64, %s66
    %p70 = scmp.eq.s32.totalorder %s9, 0
    %p71 = por %p69, %p70
    %p72 = scmp.ne.s32.totalorder %s64, %s66
    %p73 = scmp.eq.s32.totalorder %s14, 1
    %p74 = por %p72, %p73
    %p75 = scmp.ne.s32.totalorder %s66, %s67
    %p76 = scmp.eq.s32.totalorder %s14, 0
    %p77 = por %p75, %p76
    %p78 = scmp.ne.s32.totalorder %s66, %s67
    %p79 = scmp.eq.s32.totalorder %s15, 1
    %p80 = por %p78, %p79
    %p82 = scmp.ne.s32.totalorder %s67, %s81
    %p83 = scmp.eq.s32.totalorder %s15, 0
    %p84 = por %p82, %p83
    %s85 = ssub.s32 %s9, %s16
    %p86 = scmp.eq.s32.totalorder %s85, 0
    %s88 = sadd.s32 %s87, 1
    %s89 = scalar_select %p86, %s87, %s88
    %p92 = pneg %p86
    %p93 = scmp.eq.s32.totalorder %s9, 1
    %p94 = por %p92, %p93
    %p95 = scmp.ne.s32.totalorder %s87, %s90
    %p96 = scmp.eq.s32.totalorder %s9, 0
    %p97 = por %p95, %p96
    %p98 = scmp.ne.s32.totalorder %s87, %s90
    %p99 = scmp.eq.s32.totalorder %s14, 1
    %p100 = por %p98, %p99
    %p101 = scmp.ne.s32.totalorder %s90, %s91
    %p102 = scmp.eq.s32.totalorder %s14, 0
    %p103 = por %p101, %p102
    %p104 = scmp.ne.s32.totalorder %s90, %s91
    %p105 = scmp.eq.s32.totalorder %s15, 1
    %p106 = por %p104, %p105
    %p108 = scmp.ne.s32.totalorder %s91, %s107
    %p109 = scmp.eq.s32.totalorder %s15, 0
    %p110 = por %p108, %p109
    %p111 = scmp.le.s32.totalorder 1, %s9
    %p112 = scmp.lt.s32.totalorder %s9, 3
    %p113 = pnand %p111, %p112
    %p114 = pneg %p113
    // Predicated region
    $region9: #{tpu_custom_call.1} parent=5 // pred_check
      _
    $region10: #{tpu_custom_call.1} parent=5 // pred_check_branch
      %116 = sbr.rel (%p113) target = $region12
    $region11: #{tpu_custom_call.1} parent=5 // pred_region
      %s117 = ssub.s32 %s9, 1
      // Predicated region
      $region13: #{tpu_custom_call.1} parent=11 // pred_check
        %p118 = pneg %p56
      $region14: #{tpu_custom_call.1} parent=11 // pred_check_branch
        %120 = sbr.rel (%p118) target = $region16
      $region15: #{tpu_custom_call.1} parent=11 // pred_region
        _
      $region16: #{tpu_custom_call.1} parent=11 // pred_fallthru
        _
      // Predicated region
      $region17: #{tpu_custom_call.1} parent=11 // pred_check
        %p121 = pneg %p77
      $region18: #{tpu_custom_call.1} parent=11 // pred_check_branch
        %123 = sbr.rel (%p121) target = $region20
      $region19: #{tpu_custom_call.1} parent=11 // pred_region
        _
      $region20: #{tpu_custom_call.1} parent=11 // pred_fallthru
        _
    $region12: #{tpu_custom_call.1} parent=5 // pred_fallthru
      _
    %p124 = scmp.lt.s32.totalorder %s9, 2
    // Predicated region
    $region21: #{tpu_custom_call.1} parent=5 // pred_check
      %p125 = pneg %p124
    $region22: #{tpu_custom_call.1} parent=5 // pred_check_branch
      %127 = sbr.rel (%p125) target = $region24
    $region23: #{tpu_custom_call.1} parent=5 // pred_region
      // Predicated region
      $region25: #{tpu_custom_call.1} parent=23 // pred_check
        %p128 = pneg %p29
      $region26: #{tpu_custom_call.1} parent=23 // pred_check_branch
        %130 = sbr.rel (%p128) target = $region28
      $region27: #{tpu_custom_call.1} parent=23 // pred_region
        %p131 = scmp.lt.s32.totalorder %s9, 1
        %s132 = scalar_select %p131, %s9, 1
        %s133 = smul.addr %s132, 4
        %s134 = smul.addr %s133, 8
        %s135 = scalar_lea.vmem %s0, %s134
      $region28: #{tpu_custom_call.1} parent=23 // pred_fallthru
        _
    $region24: #{tpu_custom_call.1} parent=5 // pred_fallthru
      _
    %p136 = scmp.le.s32.totalorder 1, %s9
    %p137 = scmp.lt.s32.totalorder %s9, 3
    %p138 = pnand %p136, %p137
    %p139 = pneg %p138
    // Predicated region
    $region29: #{tpu_custom_call.1} parent=5 // pred_check
      _
    $region30: #{tpu_custom_call.1} parent=5 // pred_check_branch
      %141 = sbr.rel (%p138) target = $region32
    $region31: #{tpu_custom_call.1} parent=5 // pred_region
      %s142 = ssub.s32 %s9, 1
      %p143 = scmp.lt.s32.totalorder %s14, 1
      %s144 = scalar_select %p143, %s14, 1
      %s145 = smul.addr %s144, 4
      %s146 = smul.addr %s145, 8
      %s147 = scalar_lea.vmem %s0, %s146
      %p148 = pneg %p35
      %p149 = pneg %p32
      %p150 = pneg %p56
      %p151 = pneg %p53
      %p152 = pneg %p77
      %p153 = pneg %p74
      %p154 = pneg %p103
      %p155 = pneg %p100
      %p156 = scmp.lt.s32.totalorder %s14, 1
      %s157 = scalar_select %p156, %s14, 1
      %s158 = smul.addr %s157, 4
      %s159 = smul.addr %s158, 8
      %s160 = scalar_lea.vmem %s3, %s159
      %p161 = scmp.lt.s32.totalorder %s14, 1
      %s162 = scalar_select %p161, %s14, 1
      %s163 = smul.addr %s162, 4
      %s164 = smul.addr %s163, 8
      %s165 = scalar_lea.vmem %s0, %s164
      %p166 = scmp.lt.s32.totalorder %s14, 1
      %s167 = scalar_select %p166, %s14, 1
      %s168 = smul.addr %s167, 4
      %s169 = smul.addr %s168, 8
      %s170 = scalar_lea.vmem %s3, %s169
      %v171 = vld [vmem:[%s165] sm:$0xff]
      %v172 = vld [vmem:[%s165 + $0x8] sm:$0xff]
      %v173 = vld [vmem:[%s165 + $0x10] sm:$0xff]
      %v174 = vld [vmem:[%s165 + $0x18] sm:$0xff]
      %vm175 = vcmask 130048
      %v176 = vsel %vm175, %v171, 0.0
      %177 = vadd.xlane.f32.xlu0 %v176
      %v178 = vpop.xlane.xlu0 %177
      %v179 = vsel %vm175, %v172, 0.0
      %180 = vadd.xlane.f32.xlu0 %v179
      %v181 = vpop.xlane.xlu0 %180
      %v182 = vsel %vm175, %v173, 0.0
      %183 = vadd.xlane.f32.xlu0 %v182
      %v184 = vpop.xlane.xlu0 %183
      %v185 = vsel %vm175, %v174, 0.0
      %186 = vadd.xlane.f32.xlu0 %v185
      %v187 = vpop.xlane.xlu0 %186
      %v188 = vrcp.pop 16.0
      %v189 = vmul.f32 %v178, %v188
      %v190 = vmul.f32 %v181, %v188
      %v191 = vmul.f32 %v184, %v188
      %v192 = vmul.f32 %v187, %v188
      %v193 = vld [vmem:[%s1] sm:$0xff]
      %v194 = vld [vmem:[%s1 + $0x8] sm:$0xff]
      %v195 = vld [vmem:[%s1 + $0x10] sm:$0xff]
      %v196 = vld [vmem:[%s1 + $0x18] sm:$0xff]
      %v201 = vlaneseq
      %v202 = vand.u32 %v201, 127
      %v203 = vlaneseq
      %v204 = vshrl.u32 %v203, 7
      %v205 = vsub.s32 %v202, %v204
      %v206 = vrot.slane %v189, %v205
      %v207 = vadd.s32 %v202, 4294967288
      %v208 = vlaneseq
      %v209 = vshrl.u32 %v208, 7
      %v210 = vsub.s32 %v207, %v209
      %v211 = vrot.slane %v190, %v210
      %vm212 = vcmask 130112
      %v213 = vsel %vm212, %v211, %v206
      %v214 = vadd.s32 %v202, 4294967280
      %v215 = vlaneseq
      %v216 = vshrl.u32 %v215, 7
      %v217 = vsub.s32 %v214, %v216
      %v218 = vrot.slane %v191, %v217
      %vm219 = vcmask 195712
      %v220 = vsel %vm219, %v218, %v213
      %v221 = vadd.s32 %v202, 4294967272
      %v222 = vlaneseq
      %v223 = vshrl.u32 %v222, 7
      %v224 = vsub.s32 %v221, %v223
      %v225 = vrot.slane %v192, %v224
      %vm226 = vcmask 261312
      %v227 = vsel %vm226, %v225, %v220
      %vm228 = vcmask 261120
      %v229 = vsel %vm228, %v227, 0
      %231 = vmatprep.subr.mxu0 0.0
      %232 = vmatpush1.msra.mxu0 %v193
      %233 = vmatprep.subr.mxu0 0.0
      %234 = vmatpush1.msra.mxu0 %v194
      %235 = vmatprep.subr.mxu0 0.0
      %236 = vmatpush1.msra.mxu0 %v195
      %237 = vmatprep.subr.mxu0 0.0
      %238 = vmatpush1.msra.mxu0 %v196
      %239 = vmatprep.subr.mxu0 0.0
      %240 = vmatpush1.msra.mxu0 0.0
      %241 = vmatprep.subr.mxu0 0.0
      %242 = vmatpush1.msra.mxu0 0.0
      %243 = vmatprep.subr.mxu0 0.0
      %244 = vmatpush1.msra.mxu0 0.0
      %245 = vmatprep.subr.mxu0 0.0
      %246 = vmatpush1.msra.mxu0 0.0
      %247 = vmatprep.subr.mxu0 0.0
      %248 = vmatpush1.msra.mxu0 0.0
      %249 = vmatprep.subr.mxu0 0.0
      %250 = vmatpush1.msra.mxu0 0.0
      %251 = vmatprep.subr.mxu0 0.0
      %252 = vmatpush1.msra.mxu0 0.0
      %253 = vmatprep.subr.mxu0 0.0
      %254 = vmatpush1.msra.mxu0 0.0
      %255 = vmatprep.subr.mxu0 0.0
      %256 = vmatpush1.msra.mxu0 0.0
      %257 = vmatprep.subr.mxu0 0.0
      %258 = vmatpush1.msra.mxu0 0.0
      %259 = vmatprep.subr.mxu0 0.0
      %260 = vmatpush1.msra.mxu0 0.0
      %261 = vmatprep.subr.mxu0 0.0
      %262 = vmatpush1.msra.mxu0 0.0
      %263 = vmatprep.subr.mxu0 0.0
      %264 = vmatpush1.msra.mxu0 0.0
      %265 = vmatprep.subr.mxu0 0.0
      %266 = vmatpush1.msra.mxu0 0.0
      %267 = vmatprep.subr.mxu0 0.0
      %268 = vmatpush1.msra.mxu0 0.0
      %269 = vmatprep.subr.mxu0 0.0
      %270 = vmatpush1.msra.mxu0 0.0
      %271 = vmatprep.subr.mxu0 0.0
      %272 = vmatpush1.msra.mxu0 0.0
      %273 = vmatprep.subr.mxu0 0.0
      %274 = vmatpush1.msra.mxu0 0.0
      %275 = vmatprep.subr.mxu0 0.0
      %276 = vmatpush1.msra.mxu0 0.0
      %277 = vmatprep.subr.mxu0 0.0
      %278 = vmatpush1.msra.mxu0 0.0
      %279 = vmatprep.subr.mxu0 0.0
      %280 = vmatpush1.msra.mxu0 0.0
      %281 = vmatprep.subr.mxu0 0.0
      %282 = vmatpush1.msra.mxu0 0.0
      %283 = vmatprep.subr.mxu0 0.0
      %284 = vmatpush1.msra.mxu0 0.0
      %285 = vmatprep.subr.mxu0 0.0
      %286 = vmatpush1.msra.mxu0 0.0
      %287 = vmatprep.subr.mxu0 0.0
      %288 = vmatpush1.msra.mxu0 0.0
      %289 = vmatprep.subr.mxu0 0.0
      %290 = vmatpush1.msra.mxu0 0.0
      %291 = vmatprep.subr.mxu0 0.0
      %292 = vmatpush1.msra.mxu0 0.0
      %293 = vmatprep.subr.mxu0 0.0
      %294 = vmatpush1.msra.mxu0 0.0
      %295 = vmatprep.mubr.f32.mxu0 0.0
      %296 = vmatmul.mubr.f32.gmra.mrb[0].mxu0 %v229
      %v297 = vpop.f32.mrb[0].mxu0
      %v298 = vadd.f32 0.0, %v297
      %v299 = vpop.f32.mrb[0].mxu0
      %300 = vdwg.mxu0
      %v301 = vmax.f32 %v298, 0.0
      %v302 = vld [vmem:[%s2] sm:$0xff]
      %vm303 = vcmask 64512
      %v305 = vsel %vm303, %v301, 0
      %307 = vmatprep.subr.mxu0 0.0
      %308 = vmatpush1.msra.mxu0 %v302
      %309 = vmatprep.subr.mxu0 0.0
      %310 = vmatpush1.msra.mxu0 0.0
      %311 = vmatprep.subr.mxu0 0.0
      %312 = vmatpush1.msra.mxu0 0.0
      %313 = vmatprep.subr.mxu0 0.0
      %314 = vmatpush1.msra.mxu0 0.0
      %315 = vmatprep.subr.mxu0 0.0
      %316 = vmatpush1.msra.mxu0 0.0
      %317 = vmatprep.subr.mxu0 0.0
      %318 = vmatpush1.msra.mxu0 0.0
      %319 = vmatprep.subr.mxu0 0.0
      %320 = vmatpush1.msra.mxu0 0.0
      %321 = vmatprep.subr.mxu0 0.0
      %322 = vmatpush1.msra.mxu0 0.0
      %323 = vmatprep.subr.mxu0 0.0
      %324 = vmatpush1.msra.mxu0 0.0
      %325 = vmatprep.subr.mxu0 0.0
      %326 = vmatpush1.msra.mxu0 0.0
      %327 = vmatprep.subr.mxu0 0.0
      %328 = vmatpush1.msra.mxu0 0.0
      %329 = vmatprep.subr.mxu0 0.0
      %330 = vmatpush1.msra.mxu0 0.0
      %331 = vmatprep.subr.mxu0 0.0
      %332 = vmatpush1.msra.mxu0 0.0
      %333 = vmatprep.subr.mxu0 0.0
      %334 = vmatpush1.msra.mxu0 0.0
      %335 = vmatprep.subr.mxu0 0.0
      %336 = vmatpush1.msra.mxu0 0.0
      %337 = vmatprep.subr.mxu0 0.0
      %338 = vmatpush1.msra.mxu0 0.0
      %339 = vmatprep.subr.mxu0 0.0
      %340 = vmatpush1.msra.mxu0 0.0
      %341 = vmatprep.subr.mxu0 0.0
      %342 = vmatpush1.msra.mxu0 0.0
      %343 = vmatprep.subr.mxu0 0.0
      %344 = vmatpush1.msra.mxu0 0.0
      %345 = vmatprep.subr.mxu0 0.0
      %346 = vmatpush1.msra.mxu0 0.0
      %347 = vmatprep.subr.mxu0 0.0
      %348 = vmatpush1.msra.mxu0 0.0
      %349 = vmatprep.subr.mxu0 0.0
      %350 = vmatpush1.msra.mxu0 0.0
      %351 = vmatprep.subr.mxu0 0.0
      %352 = vmatpush1.msra.mxu0 0.0
      %353 = vmatprep.subr.mxu0 0.0
      %354 = vmatpush1.msra.mxu0 0.0
      %355 = vmatprep.subr.mxu0 0.0
      %356 = vmatpush1.msra.mxu0 0.0
      %357 = vmatprep.subr.mxu0 0.0
      %358 = vmatpush1.msra.mxu0 0.0
      %359 = vmatprep.subr.mxu0 0.0
      %360 = vmatpush1.msra.mxu0 0.0
      %361 = vmatprep.subr.mxu0 0.0
      %362 = vmatpush1.msra.mxu0 0.0
      %363 = vmatprep.subr.mxu0 0.0
      %364 = vmatpush1.msra.mxu0 0.0
      %365 = vmatprep.subr.mxu0 0.0
      %366 = vmatpush1.msra.mxu0 0.0
      %367 = vmatprep.subr.mxu0 0.0
      %368 = vmatpush1.msra.mxu0 0.0
      %369 = vmatprep.subr.mxu0 0.0
      %370 = vmatpush1.msra.mxu0 0.0
      %371 = vmatprep.mubr.f32.mxu0 0.0
      %372 = vmatmul.mubr.f32.gmra.mrb[0].mxu0 %v305
      %v373 = vpop.f32.mrb[0].mxu0
      %v374 = vadd.f32 0.0, %v373
      %v375 = vpop.f32.mrb[0].mxu0
      %376 = vdwg.mxu0
      %v377 = vxor.u32 %v374, 2147483648
      %v378 = vmul.f32 %v377, 1.442695
      %v379 = vpow.pop %v378
      %v380 = vadd.f32 %v379, 1.0
      %v381 = vrcp.pop %v380
      %v382 = vmul.f32 1.0, %v381
      %v383 = vlaneseq
      %v384 = vshrl.u32 %v383, 7
      %v385 = vsub.s32 0, %v384
      %v386 = vrot.slane %v382, %v385
      %388 = vbcast.lane.b32.xlu0 %v386, 256
      %v389 = vpop.permute.xlu0 %388
      %s391 = sor.u32 256, 8
      %392 = vbcast.lane.b32.xlu0 %v386, %s391
      %v393 = vpop.permute.xlu0 %392
      %s395 = sor.u32 256, 16
      %396 = vbcast.lane.b32.xlu0 %v386, %s395
      %v397 = vpop.permute.xlu0 %396
      %s399 = sor.u32 256, 24
      %400 = vbcast.lane.b32.xlu0 %v386, %s399
      %v401 = vpop.permute.xlu0 %400
      %v402 = vmul.f32 %v171, %v389
      %v403 = vmul.f32 %v172, %v393
      %v404 = vmul.f32 %v173, %v397
      %v405 = vmul.f32 %v174, %v401
      %406 = vst.msk [vmem:[%s170] sm:$0xff] %vm175, %v402
      %407 = vst.msk [vmem:[%s170 + $0x8] sm:$0xff] %vm175, %v403
      %408 = vst.msk [vmem:[%s170 + $0x10] sm:$0xff] %vm175, %v404
      %409 = vst.msk [vmem:[%s170 + $0x18] sm:$0xff] %vm175, %v405
      %p410 = scmp.lt.s32.totalorder %s14, 1
      %s411 = scalar_select %p410, %s14, 1
      %s412 = smul.addr %s411, 4
      %s413 = smul.addr %s412, 8
      %s414 = scalar_lea.vmem %s3, %s413
      // Predicated region
      $region33: #{tpu_custom_call.1} parent=31 // pred_check
        %p415 = pneg %p100
      $region34: #{tpu_custom_call.1} parent=31 // pred_check_branch
        %417 = sbr.rel (%p415) target = $region36
      $region35: #{tpu_custom_call.1} parent=31 // pred_region
        _
      $region36: #{tpu_custom_call.1} parent=31 // pred_fallthru
        _
    $region32: #{tpu_custom_call.1} parent=5 // pred_fallthru
      _
    %p418 = scmp.le.s32.totalorder 2, %s9
    // Predicated region
    $region37: #{tpu_custom_call.1} parent=5 // pred_check
      %p419 = pneg %p418
    $region38: #{tpu_custom_call.1} parent=5 // pred_check_branch
      %421 = sbr.rel (%p419) target = $region40
    $region39: #{tpu_custom_call.1} parent=5 // pred_region
      %s422 = ssub.s32 %s9, 2
      // Predicated region
      $region41: #{tpu_custom_call.1} parent=39 // pred_check
        %p423 = pneg %p106
      $region42: #{tpu_custom_call.1} parent=39 // pred_check_branch
        %425 = sbr.rel (%p423) target = $region44
      $region43: #{tpu_custom_call.1} parent=39 // pred_region
        %p426 = scmp.lt.s32.totalorder %s15, 1
        %s427 = scalar_select %p426, %s15, 1
        %s428 = smul.addr %s427, 4
        %s429 = smul.addr %s428, 8
        %s430 = scalar_lea.vmem %s3, %s429
      $region44: #{tpu_custom_call.1} parent=39 // pred_fallthru
        _
    $region40: #{tpu_custom_call.1} parent=5 // pred_fallthru
      _
  $region6: #{tpu_custom_call.1} parent=0 // loop_footer
    %s13 = sadd.s32 1, %s9
  $region7: #{tpu_custom_call.1} parent=0 // loop_footer_branch
    %8 = sbr.rel target = $region3
  $region8: #{tpu_custom_call.1} parent=0 // loop_exit
    _

</llo_original>
